<compile_context>
chip_gen: v7x
topology: tpu7x:2x2x1
jax: 0.10.0
libtpu: 0.0.40
codegen_flags: <defaults>
</compile_context>

<pallas_src>
import functools
import math

import jax
import jax.numpy as jnp
from jax.experimental import pallas as pl
from jax.experimental.pallas import tpu as pltpu


def _round_up(n, m):
    return ((n + m - 1) // m) * m


def _reg_net_kernel(x_ref, w1_ref, b1_ref, wh_ref, bh_ref, out_ref, *, out_dim):
    # fc1 + ReLU (MXU matmul, f32 accumulate).
    w1 = w1_ref[...]
    h = jnp.dot(x_ref[...].astype(w1.dtype), w1,
                preferred_element_type=jnp.float32) + b1_ref[...]
    h = jnp.maximum(h, 0.0)

    # Packed heads: z[:, :O] = mean, z[:, O:2O] = 0.5 * logvar (0.5 already
    # folded into wh/bh at pack time); lanes >= 2O are zero padding.
    wh = wh_ref[...]
    z = jnp.dot(h.astype(wh.dtype), wh,
                preferred_element_type=jnp.float32) + bh_ref[...]

    # std = exp(.) on lanes >= O. exp runs on the EUP slot, so applying it to
    # the whole lane-dense tile and lane-selecting is effectively free and
    # avoids any layout-crossing slice/concat inside the kernel. (exp of a
    # discarded mean lane may overflow to inf; jnp.where selects it away,
    # never producing NaN in kept lanes.)
    lane = jax.lax.broadcasted_iota(jnp.int32, z.shape, dimension=1)
    out = jnp.where(lane < out_dim, z, jnp.exp(z))
    out_ref[...] = out.astype(out_ref.dtype)


def pack_params(w1, b1, wm, bm, wl, bl, *, matmul_dtype=jnp.float32):
    """Pack / pad parameters ONCE (hoisted out of the per-call forward path).

    w1: [D_in, H]; b1: [1, H]; wm/wl: [H, O]; bm/bl: [1, O].
    Returns (w1_p, b1_p, w_heads, b_heads, out_dim) with H and 2*O zero-padded
    up to multiples of 128 and the 0.5 of exp(0.5*logvar) folded into the
    logvar weights/bias. Use matmul_dtype=jnp.bfloat16 on v6e/v7x if the
    downstream tolerance allows (accumulation stays f32).
    """
    D_in, H = w1.shape
    O = wm.shape[1]
    Hp = _round_up(H, 128)
    W2p = _round_up(2 * O, 128)

    w1_p = jnp.zeros((D_in, Hp), matmul_dtype).at[:, :H].set(w1.astype(matmul_dtype))
    b1_p = jnp.zeros((1, Hp), jnp.float32).at[:, :H].set(b1.astype(jnp.float32))

    w_heads = (
        jnp.zeros((Hp, W2p), matmul_dtype)
        .at[:H, :O].set(wm.astype(matmul_dtype))
        .at[:H, O:2 * O].set((0.5 * wl).astype(matmul_dtype))
    )
    b_heads = (
        jnp.zeros((1, W2p), jnp.float32)
        .at[:, :O].set(bm.astype(jnp.float32))
        .at[:, O:2 * O].set((0.5 * bl).astype(jnp.float32))
    )
    return w1_p, b1_p, w_heads, b_heads, O


def _pick_row_tile(B, D_in, Hp, W2p, block_rows, itemsize, vmem_budget):
    # Cap at ceil(B/2) (rounded to a sublane multiple of 8) so the batch grid
    # has >= 2 steps whenever B allows it -> both v7x TensorCores get work.
    tb = min(block_rows, max(8, _round_up(pl.cdiv(B, 2), 8)))

    def bytes_needed(t):
        resident = 2 * (D_in * Hp + Hp + Hp * W2p + W2p)      # double-buffered weights
        per_step = 2 * t * D_in + 2 * t * W2p + 3 * t * Hp    # x/out buffers + h/z temps
        return (resident + per_step) * itemsize

    while tb > 8 and bytes_needed(tb) > vmem_budget:
        tb = max(8, _round_up(tb // 2, 8))
    return tb, bytes_needed(tb)


def regularization_network_forward(x, w1_p, b1_p, w_heads, b_heads, out_dim,
                                   *, block_rows=1024):
    """x: [B, D_in]; packed params from pack_params(). Returns (mean, std)."""
    B, D_in = x.shape
    Hp = w1_p.shape[1]
    W2p = w_heads.shape[1]

    # Budget against v7x's 64 MiB physical VMEM (leaves pipeline headroom).
    tb, vmem_needed = _pick_row_tile(B, D_in, Hp, W2p, block_rows,
                                     itemsize=4, vmem_budget=40 << 20)
    grid = (pl.cdiv(B, tb),)
    vmem_limit = int(min(max(vmem_needed * 5 // 4, 32 << 20), 64 << 20))

    cost = pl.CostEstimate(
        flops=2 * B * (D_in * Hp + Hp * W2p),
        transcendentals=B * W2p,
        bytes_accessed=(4 * (B * D_in + B * W2p + Hp + W2p)
                        + w1_p.dtype.itemsize * D_in * Hp
                        + w_heads.dtype.itemsize * Hp * W2p),
    )

    kernel = functools.partial(_reg_net_kernel, out_dim=out_dim)

    # TODO(synk): on v7x with large resident weights (D_in*Hp approaching VMEM),
    # mark the four constant-index_map weight/bias specs pipeline_mode=pl.Buffered(1)
    # to drop their double buffers and keep tb large.
    packed = pl.pallas_call(
        kernel,
        out_shape=jax.ShapeDtypeStruct((B, W2p), jnp.float32),
        grid=grid,
        in_specs=[
            pl.BlockSpec((tb, D_in), lambda i: (i, 0)),    # x: tiled over batch
            pl.BlockSpec((D_in, Hp), lambda i: (0, 0)),    # w1: VMEM-resident
            pl.BlockSpec((1, Hp), lambda i: (0, 0)),       # b1: VMEM-resident
            pl.BlockSpec((Hp, W2p), lambda i: (0, 0)),     # packed head weights
            pl.BlockSpec((1, W2p), lambda i: (0, 0)),      # packed head bias
        ],
        out_specs=pl.BlockSpec((tb, W2p), lambda i: (i, 0)),
        compiler_params=pltpu.CompilerParams(
            dimension_semantics=("parallel",),             # megacore sharding on v7x
            vmem_limit_bytes=vmem_limit,
        ),
        cost_estimate=cost,
    )(x, w1_p, b1_p, w_heads, b_heads)

    mean = packed[:, :out_dim]
    std = packed[:, out_dim:2 * out_dim]
    return mean, std


if __name__ == "__main__":
    # Small shapes consistent with the module's forward.
    batch, input_dim, hidden_dim, output_dim = 8, 32, 64, 16

    key = jax.random.PRNGKey(0)
    kx, k1, k2, k3 = jax.random.split(key, 4)

    def xavier_uniform(k, fan_in, fan_out):
        # nn.init.xavier_uniform_ on an [out, in] Linear weight, returned in
        # the transposed [in, out] layout the kernel consumes.
        bound = math.sqrt(6.0 / (fan_in + fan_out))
        return jax.random.uniform(k, (fan_in, fan_out), jnp.float32, -bound, bound)

    x = jax.random.normal(kx, (batch, input_dim), jnp.float32)
    w1 = xavier_uniform(k1, input_dim, hidden_dim)
    b1 = jnp.zeros((1, hidden_dim), jnp.float32)           # nn.init.constant_(bias, 0)
    wm = xavier_uniform(k2, hidden_dim, output_dim)
    bm = jnp.zeros((1, output_dim), jnp.float32)
    wl = xavier_uniform(k3, hidden_dim, output_dim)
    bl = jnp.zeros((1, output_dim), jnp.float32)

    # Packing / padding / 0.5-fold hoisted out of the forward path: done once.
    w1_p, b1_p, w_heads, b_heads, O = pack_params(w1, b1, wm, bm, wl, bl)

    fwd = jax.jit(functools.partial(regularization_network_forward, out_dim=O))
    mean, std = fwd(x, w1_p, b1_p, w_heads, b_heads)
    jax.block_until_ready((mean, std))

    # Reference check in plain JAX (f32 end-to-end; padding is exact).
    h_ref = jnp.maximum(x @ w1 + b1, 0.0)
    mean_ref = h_ref @ wm + bm
    std_ref = jnp.exp(0.5 * (h_ref @ wl + bl))
    assert mean.shape == (batch, output_dim) and std.shape == (batch, output_dim)
    assert jnp.allclose(mean, mean_ref, atol=1e-5), "mean mismatch"
    assert jnp.allclose(std, std_ref, atol=1e-5), "std mismatch"

    print("KERNEL_OK")
</pallas_src>

<mosaic_0001>
module attributes {stable_mosaic.version = 11 : i64} {
  func.func @_reg_net_kernel(%arg0: i32, %arg1: memref<8x32xf32, #tpu.memory_space<vmem>>, %arg2: memref<32x128xf32, #tpu.memory_space<vmem>>, %arg3: memref<1x128xf32, #tpu.memory_space<vmem>>, %arg4: memref<128x128xf32, #tpu.memory_space<vmem>>, %arg5: memref<1x128xf32, #tpu.memory_space<vmem>>, %arg6: memref<8x128xf32, #tpu.memory_space<vmem>>) attributes {dimension_semantics = [#tpu.dimension_semantics<parallel>], iteration_bounds = array<i64: 1>, scalar_prefetch = 0 : i64, scratch_operands = 0 : i64, tpu.core_type = #tpu.core_type<tc>, window_params = [{transform_indices = @transform_0, window_bounds = array<i64: 8, 32>}, {pipeline_mode = #tpu.pipeline_mode<synchronous>, transform_indices = @transform_1, window_bounds = array<i64: 32, 128>}, {pipeline_mode = #tpu.pipeline_mode<synchronous>, transform_indices = @transform_2, window_bounds = array<i64: 1, 128>}, {pipeline_mode = #tpu.pipeline_mode<synchronous>, transform_indices = @transform_3, window_bounds = array<i64: 128, 128>}, {pipeline_mode = #tpu.pipeline_mode<synchronous>, transform_indices = @transform_4, window_bounds = array<i64: 1, 128>}, {transform_indices = @transform_5, window_bounds = array<i64: 8, 128>}]} {
    %c0 = arith.constant 0 : index
    %c0_0 = arith.constant 0 : index
    %0 = vector.load %arg2[%c0, %c0_0] : memref<32x128xf32, #tpu.memory_space<vmem>>, vector<32x128xf32>
    %c0_1 = arith.constant 0 : index
    %c0_2 = arith.constant 0 : index
    %1 = vector.load %arg1[%c0_1, %c0_2] : memref<8x32xf32, #tpu.memory_space<vmem>>, vector<8x32xf32>
    %cst = arith.constant dense<0.000000e+00> : vector<8x128xf32>
    %2 = tpu.matmul %1, %0, %cst {dimension_numbers = #tpu.dot_dimension_numbers<[1], [0], [0], [1], [0, 0, 1, 1], [], []>} : vector<8x32xf32>, vector<32x128xf32>, vector<8x128xf32> -> vector<8x128xf32>
    %c0_3 = arith.constant 0 : index
    %c0_4 = arith.constant 0 : index
    %3 = vector.load %arg3[%c0_3, %c0_4] : memref<1x128xf32, #tpu.memory_space<vmem>>, vector<1x128xf32>
    %4 = vector.broadcast %3 : vector<1x128xf32> to vector<8x128xf32>
    %5 = arith.addf %2, %4 : vector<8x128xf32>
    %cst_5 = arith.constant 0.000000e+00 : f32
    %6 = vector.broadcast %cst_5 : f32 to vector<8x128xf32>
    %7 = arith.maximumf %5, %6 : vector<8x128xf32>
    %c0_6 = arith.constant 0 : index
    %c0_7 = arith.constant 0 : index
    %8 = vector.load %arg4[%c0_6, %c0_7] : memref<128x128xf32, #tpu.memory_space<vmem>>, vector<128x128xf32>
    %cst_8 = arith.constant dense<0.000000e+00> : vector<8x128xf32>
    %9 = tpu.matmul %7, %8, %cst_8 {dimension_numbers = #tpu.dot_dimension_numbers<[1], [0], [0], [1], [0, 0, 1, 1], [], []>} : vector<8x128xf32>, vector<128x128xf32>, vector<8x128xf32> -> vector<8x128xf32>
    %c0_9 = arith.constant 0 : index
    %c0_10 = arith.constant 0 : index
    %10 = vector.load %arg5[%c0_9, %c0_10] : memref<1x128xf32, #tpu.memory_space<vmem>>, vector<1x128xf32>
    %11 = vector.broadcast %10 : vector<1x128xf32> to vector<8x128xf32>
    %12 = arith.addf %9, %11 : vector<8x128xf32>
    %13 = tpu.iota {dimensions = array<i32: 1>} : vector<8x128xi32>
    %c16_i32 = arith.constant 16 : i32
    %14 = vector.broadcast %c16_i32 : i32 to vector<8x128xi32>
    %15 = arith.cmpi slt, %13, %14 : vector<8x128xi32>
    %16 = math.exp %12 : vector<8x128xf32>
    %17 = arith.select %15, %12, %16 : vector<8x128xi1>, vector<8x128xf32>
    %c0_11 = arith.constant 0 : index
    %c0_12 = arith.constant 0 : index
    %18 = vector.load %arg6[%c0_11, %c0_12] : memref<8x128xf32, #tpu.memory_space<vmem>>, vector<8x128xf32>
    tpu.vector_store %arg6[%c0_11, %c0_12], %17 {strides = array<i32>} : memref<8x128xf32, #tpu.memory_space<vmem>>, vector<8x128xf32>,
    return
  }
  func.func @transform_0(%arg0: i32) -> (i32, i32) {
    %c0_i32 = arith.constant 0 : i32
    %c0_i32_0 = arith.constant 0 : i32
    return %arg0, %c0_i32 : i32, i32
  }
  func.func @transform_1(%arg0: i32) -> (i32, i32) {
    %c0_i32 = arith.constant 0 : i32
    %c0_i32_0 = arith.constant 0 : i32
    %c0_i32_1 = arith.constant 0 : i32
    return %c0_i32, %c0_i32_0 : i32, i32
  }
  func.func @transform_2(%arg0: i32) -> (i32, i32) {
    %c0_i32 = arith.constant 0 : i32
    %c0_i32_0 = arith.constant 0 : i32
    %c0_i32_1 = arith.constant 0 : i32
    return %c0_i32, %c0_i32_0 : i32, i32
  }
  func.func @transform_3(%arg0: i32) -> (i32, i32) {
    %c0_i32 = arith.constant 0 : i32
    %c0_i32_0 = arith.constant 0 : i32
    %c0_i32_1 = arith.constant 0 : i32
    return %c0_i32, %c0_i32_0 : i32, i32
  }
  func.func @transform_4(%arg0: i32) -> (i32, i32) {
    %c0_i32 = arith.constant 0 : i32
    %c0_i32_0 = arith.constant 0 : i32
    %c0_i32_1 = arith.constant 0 : i32
    return %c0_i32, %c0_i32_0 : i32, i32
  }
  func.func @transform_5(%arg0: i32) -> (i32, i32) {
    %c0_i32 = arith.constant 0 : i32
    %c0_i32_0 = arith.constant 0 : i32
    return %arg0, %c0_i32 : i32, i32
  }
}

</mosaic_0001>

<llo_original>
// kernel: regularization_network_forward.1
$region0: #{regularization_network_forward.1}
  #allocation0 [shape = 'u32[]', space=smem, size = 0x4, offset = 0x4, fixed_abs, tag = 'smem constant byte address 0x4 - core index']
  #allocation1 [shape = 'u32[144,128]{1,0:T(1,128)}', space=vmem, size = 0x12000, scoped, tag = 'internal scratch']
  %s0 = inlined_call_operand.hbm [shape: f32[8,32], index: 0, kind: input, shape index: {}]
  %s1 = inlined_call_operand.hbm [shape: f32[32,128], index: 1, kind: input, shape index: {}]
  %s2 = inlined_call_operand.vmem [shape: f32[1,128], index: 2, kind: input, shape index: {}]
  %s3 = inlined_call_operand.hbm [shape: f32[128,128], index: 3, kind: input, shape index: {}]
  %s4 = inlined_call_operand.vmem [shape: f32[1,128], index: 4, kind: input, shape index: {}]
  %s5 = inlined_call_operand.vmem [shape: f32[8,128], index: 5, kind: output, shape index: {}]
  %s6 = sld [smem:[#allocation0]]
  $region42: #{regularization_network_forward.1} parent=0
    _
  %s8 = ssub.s32 1, %s6
  %s9 = scalar_select 0, %s8, %s6
  $region1: #{regularization_network_forward.1} parent=0
    #allocation2 [shape = 'u8[4096]{0}', space=vmem, size = 0x1000, scoped, tag = 'input window, operand 0, single buffered']
    #allocation3 [shape = 's32[1]{0}', space=sflag, size = 0x4, scoped, tag = 'scoped memory for regularization_network_forward.1']
    #allocation4 [shape = 'u8[16384]{0}', space=vmem, size = 0x4000, scoped, tag = 'input window, operand 1, single buffered']
    #allocation5 [shape = 's32[1]{0}', space=sflag, size = 0x4, scoped, tag = 'scoped memory for regularization_network_forward.1']
    #allocation6 [shape = 'u8[65536]{0}', space=vmem, size = 0x10000, scoped, tag = 'input window, operand 3, single buffered']
    %10 = vsyncpa [#allocation3], 0
    %11 = vsyncpa [#allocation5], 0
    // Predicated region
    $region2: #{regularization_network_forward.1} parent=1 // pred_check
      _
    $region3: #{regularization_network_forward.1} parent=1 // pred_check_branch
      %13 = sbr.rel (0) target = $region5
    $region4: #{regularization_network_forward.1} parent=1 // pred_region
      %s15 = ssub.s32 128, 128
      %16 = vsyncadd [#allocation3], %s15
      %s18 = sshll.u32 [#allocation2], 4
      %s19 = int_to_ptr.vmem [resolvable:$true] %s18
      %21 = dma.hbm_to_vmem [thread:$0]  %s0, 128, %s19, [#allocation3]
    $region5: #{regularization_network_forward.1} parent=1 // pred_fallthru
      _
    // Predicated region
    $region6: #{regularization_network_forward.1} parent=1 // pred_check
      _
    $region7: #{regularization_network_forward.1} parent=1 // pred_check_branch
      %23 = sbr.rel (0) target = $region9
    $region8: #{regularization_network_forward.1} parent=1 // pred_region
      %s25 = ssub.s32 512, 512
      %26 = vsyncadd [#allocation5], %s25
      %s27 = sshll.u32 [#allocation4], 4
      %s28 = int_to_ptr.vmem [resolvable:$true] %s27
      %33 = dma.hbm_to_vmem [thread:$0]  %s1, 512, %s28, [#allocation5], 128, 128, 8
    $region9: #{regularization_network_forward.1} parent=1 // pred_fallthru
      _
    // Predicated region
    $region10: #{regularization_network_forward.1} parent=1 // pred_check
      _
    $region11: #{regularization_network_forward.1} parent=1 // pred_check_branch
      %35 = sbr.rel (0) target = $region13
    $region12: #{regularization_network_forward.1} parent=1 // pred_region
      _
    $region13: #{regularization_network_forward.1} parent=1 // pred_fallthru
      _
    // Predicated region
    $region14: #{regularization_network_forward.1} parent=1 // pred_check
      _
    $region15: #{regularization_network_forward.1} parent=1 // pred_check_branch
      %37 = sbr.rel (0) target = $region17
    $region16: #{regularization_network_forward.1} parent=1 // pred_region
      %s39 = ssub.s32 2048, 2048
      %40 = vsyncadd [#allocation5], %s39
      %s41 = sshll.u32 [#allocation6], 4
      %s42 = int_to_ptr.vmem [resolvable:$true] %s41
      %47 = dma.hbm_to_vmem [thread:$0]  %s3, 2048, %s42, [#allocation5], 128, 128, 8
    $region17: #{regularization_network_forward.1} parent=1 // pred_fallthru
      _
    // Predicated region
    $region18: #{regularization_network_forward.1} parent=1 // pred_check
      _
    $region19: #{regularization_network_forward.1} parent=1 // pred_check_branch
      %49 = sbr.rel (0) target = $region21
    $region20: #{regularization_network_forward.1} parent=1 // pred_region
      _
    $region21: #{regularization_network_forward.1} parent=1 // pred_fallthru
      _
    // Predicated region
    $region22: #{regularization_network_forward.1} parent=1 // pred_check
      _
    $region23: #{regularization_network_forward.1} parent=1 // pred_check_branch
      %51 = sbr.rel (0) target = $region25
    $region24: #{regularization_network_forward.1} parent=1 // pred_region
      %52 = dma.done [#allocation3], 128
    $region25: #{regularization_network_forward.1} parent=1 // pred_fallthru
      _
    // Predicated region
    $region26: #{regularization_network_forward.1} parent=1 // pred_check
      _
    $region27: #{regularization_network_forward.1} parent=1 // pred_check_branch
      %54 = sbr.rel (0) target = $region29
    $region28: #{regularization_network_forward.1} parent=1 // pred_region
      %55 = dma.done [#allocation5], 512
    $region29: #{regularization_network_forward.1} parent=1 // pred_fallthru
      _
    // Predicated region
    $region30: #{regularization_network_forward.1} parent=1 // pred_check
      _
    $region31: #{regularization_network_forward.1} parent=1 // pred_check_branch
      %57 = sbr.rel (0) target = $region33
    $region32: #{regularization_network_forward.1} parent=1 // pred_region
      %58 = dma.done [#allocation5], 2048
    $region33: #{regularization_network_forward.1} parent=1 // pred_fallthru
      _
    %v59 = vld [vmem:[#allocation4] sm:$0xff]
    %v60 = vld [vmem:[#allocation4 + $0x8] sm:$0xff]
    %v61 = vld [vmem:[#allocation4 + $0x10] sm:$0xff]
    %v62 = vld [vmem:[#allocation4 + $0x18] sm:$0xff]
    %v63 = vld [vmem:[#allocation2] sm:$0xff]
    %v64 = vld [vmem:[%s2] sm:$0x1]
    %v66 = vlaneseq
    %v67 = vshrl.u32 %v66, 7
    %v68 = vsub.s32 0, %v67
    %v69 = vrot.slane %v64, %v68
    %vm71 = vcmask 261120
    %v73 = vsel %vm71, %v63, 0
    %75 = vmatprep.subr.mxu0 0.0
    %76 = vmatpush1.msra.mxu0 %v59
    %77 = vmatprep.subr.mxu0 0.0
    %78 = vmatpush1.msra.mxu0 %v60
    %79 = vmatprep.subr.mxu0 0.0
    %80 = vmatpush1.msra.mxu0 %v61
    %81 = vmatprep.subr.mxu0 0.0
    %82 = vmatpush1.msra.mxu0 %v62
    %83 = vmatprep.subr.mxu0 0.0
    %84 = vmatpush1.msra.mxu0 0.0
    %85 = vmatprep.subr.mxu0 0.0
    %86 = vmatpush1.msra.mxu0 0.0
    %87 = vmatprep.subr.mxu0 0.0
    %88 = vmatpush1.msra.mxu0 0.0
    %89 = vmatprep.subr.mxu0 0.0
    %90 = vmatpush1.msra.mxu0 0.0
    %91 = vmatprep.subr.mxu0 0.0
    %92 = vmatpush1.msra.mxu0 0.0
    %93 = vmatprep.subr.mxu0 0.0
    %94 = vmatpush1.msra.mxu0 0.0
    %95 = vmatprep.subr.mxu0 0.0
    %96 = vmatpush1.msra.mxu0 0.0
    %97 = vmatprep.subr.mxu0 0.0
    %98 = vmatpush1.msra.mxu0 0.0
    %99 = vmatprep.subr.mxu0 0.0
    %100 = vmatpush1.msra.mxu0 0.0
    %101 = vmatprep.subr.mxu0 0.0
    %102 = vmatpush1.msra.mxu0 0.0
    %103 = vmatprep.subr.mxu0 0.0
    %104 = vmatpush1.msra.mxu0 0.0
    %105 = vmatprep.subr.mxu0 0.0
    %106 = vmatpush1.msra.mxu0 0.0
    %107 = vmatprep.subr.mxu0 0.0
    %108 = vmatpush1.msra.mxu0 0.0
    %109 = vmatprep.subr.mxu0 0.0
    %110 = vmatpush1.msra.mxu0 0.0
    %111 = vmatprep.subr.mxu0 0.0
    %112 = vmatpush1.msra.mxu0 0.0
    %113 = vmatprep.subr.mxu0 0.0
    %114 = vmatpush1.msra.mxu0 0.0
    %115 = vmatprep.subr.mxu0 0.0
    %116 = vmatpush1.msra.mxu0 0.0
    %117 = vmatprep.subr.mxu0 0.0
    %118 = vmatpush1.msra.mxu0 0.0
    %119 = vmatprep.subr.mxu0 0.0
    %120 = vmatpush1.msra.mxu0 0.0
    %121 = vmatprep.subr.mxu0 0.0
    %122 = vmatpush1.msra.mxu0 0.0
    %123 = vmatprep.subr.mxu0 0.0
    %124 = vmatpush1.msra.mxu0 0.0
    %125 = vmatprep.subr.mxu0 0.0
    %126 = vmatpush1.msra.mxu0 0.0
    %127 = vmatprep.subr.mxu0 0.0
    %128 = vmatpush1.msra.mxu0 0.0
    %129 = vmatprep.subr.mxu0 0.0
    %130 = vmatpush1.msra.mxu0 0.0
    %131 = vmatprep.subr.mxu0 0.0
    %132 = vmatpush1.msra.mxu0 0.0
    %133 = vmatprep.subr.mxu0 0.0
    %134 = vmatpush1.msra.mxu0 0.0
    %135 = vmatprep.subr.mxu0 0.0
    %136 = vmatpush1.msra.mxu0 0.0
    %137 = vmatprep.subr.mxu0 0.0
    %138 = vmatpush1.msra.mxu0 0.0
    %139 = vmatprep.mubr.f32.mxu0 0.0
    %140 = vmatmul.mubr.f32.gmra.mrb[0].mxu0 %v73
    %v141 = vpop.f32.mrb[0].mxu0
    %v142 = vadd.f32 %v69, %v141
    %v143 = vpop.f32.mrb[0].mxu0
    %144 = vdwg.mxu0
    %v145 = vmax.f32 %v142, 0.0
    %v146 = vld [vmem:[#allocation6] sm:$0xff]
    %v147 = vld [vmem:[#allocation6 + $0x8] sm:$0xff]
    %v148 = vld [vmem:[#allocation6 + $0x10] sm:$0xff]
    %v149 = vld [vmem:[#allocation6 + $0x18] sm:$0xff]
    %v150 = vld [vmem:[#allocation6 + $0x20] sm:$0xff]
    %v151 = vld [vmem:[#allocation6 + $0x28] sm:$0xff]
    %v152 = vld [vmem:[#allocation6 + $0x30] sm:$0xff]
    %v153 = vld [vmem:[#allocation6 + $0x38] sm:$0xff]
    %v154 = vld [vmem:[#allocation6 + $0x40] sm:$0xff]
    %v155 = vld [vmem:[#allocation6 + $0x48] sm:$0xff]
    %v156 = vld [vmem:[#allocation6 + $0x50] sm:$0xff]
    %v157 = vld [vmem:[#allocation6 + $0x58] sm:$0xff]
    %v158 = vld [vmem:[#allocation6 + $0x60] sm:$0xff]
    %v159 = vld [vmem:[#allocation6 + $0x68] sm:$0xff]
    %v160 = vld [vmem:[#allocation6 + $0x70] sm:$0xff]
    %v161 = vld [vmem:[#allocation6 + $0x78] sm:$0xff]
    %v162 = vld [vmem:[%s4] sm:$0x1]
    %v164 = vlaneseq
    %v165 = vshrl.u32 %v164, 7
    %v166 = vsub.s32 0, %v165
    %v167 = vrot.slane %v162, %v166
    %169 = vmatprep.subr.mxu0 0.0
    %170 = vmatpush1.msra.mxu0 %v146
    %171 = vmatprep.subr.mxu0 0.0
    %172 = vmatpush1.msra.mxu0 %v147
    %173 = vmatprep.subr.mxu0 0.0
    %174 = vmatpush1.msra.mxu0 %v148
    %175 = vmatprep.subr.mxu0 0.0
    %176 = vmatpush1.msra.mxu0 %v149
    %177 = vmatprep.subr.mxu0 0.0
    %178 = vmatpush1.msra.mxu0 %v150
    %179 = vmatprep.subr.mxu0 0.0
    %180 = vmatpush1.msra.mxu0 %v151
    %181 = vmatprep.subr.mxu0 0.0
    %182 = vmatpush1.msra.mxu0 %v152
    %183 = vmatprep.subr.mxu0 0.0
    %184 = vmatpush1.msra.mxu0 %v153
    %185 = vmatprep.subr.mxu0 0.0
    %186 = vmatpush1.msra.mxu0 %v154
    %187 = vmatprep.subr.mxu0 0.0
    %188 = vmatpush1.msra.mxu0 %v155
    %189 = vmatprep.subr.mxu0 0.0
    %190 = vmatpush1.msra.mxu0 %v156
    %191 = vmatprep.subr.mxu0 0.0
    %192 = vmatpush1.msra.mxu0 %v157
    %193 = vmatprep.subr.mxu0 0.0
    %194 = vmatpush1.msra.mxu0 %v158
    %195 = vmatprep.subr.mxu0 0.0
    %196 = vmatpush1.msra.mxu0 %v159
    %197 = vmatprep.subr.mxu0 0.0
    %198 = vmatpush1.msra.mxu0 %v160
    %199 = vmatprep.subr.mxu0 0.0
    %200 = vmatpush1.msra.mxu0 %v161
    %201 = vmatprep.subr.mxu0 0.0
    %202 = vmatpush1.msra.mxu0 0.0
    %203 = vmatprep.subr.mxu0 0.0
    %204 = vmatpush1.msra.mxu0 0.0
    %205 = vmatprep.subr.mxu0 0.0
    %206 = vmatpush1.msra.mxu0 0.0
    %207 = vmatprep.subr.mxu0 0.0
    %208 = vmatpush1.msra.mxu0 0.0
    %209 = vmatprep.subr.mxu0 0.0
    %210 = vmatpush1.msra.mxu0 0.0
    %211 = vmatprep.subr.mxu0 0.0
    %212 = vmatpush1.msra.mxu0 0.0
    %213 = vmatprep.subr.mxu0 0.0
    %214 = vmatpush1.msra.mxu0 0.0
    %215 = vmatprep.subr.mxu0 0.0
    %216 = vmatpush1.msra.mxu0 0.0
    %217 = vmatprep.subr.mxu0 0.0
    %218 = vmatpush1.msra.mxu0 0.0
    %219 = vmatprep.subr.mxu0 0.0
    %220 = vmatpush1.msra.mxu0 0.0
    %221 = vmatprep.subr.mxu0 0.0
    %222 = vmatpush1.msra.mxu0 0.0
    %223 = vmatprep.subr.mxu0 0.0
    %224 = vmatpush1.msra.mxu0 0.0
    %225 = vmatprep.subr.mxu0 0.0
    %226 = vmatpush1.msra.mxu0 0.0
    %227 = vmatprep.subr.mxu0 0.0
    %228 = vmatpush1.msra.mxu0 0.0
    %229 = vmatprep.subr.mxu0 0.0
    %230 = vmatpush1.msra.mxu0 0.0
    %231 = vmatprep.subr.mxu0 0.0
    %232 = vmatpush1.msra.mxu0 0.0
    %233 = vmatprep.mubr.f32.mxu0 0.0
    %234 = vmatmul.mubr.f32.gmra.mrb[0].mxu0 %v145
    %v235 = vpop.f32.mrb[0].mxu0
    %v236 = vadd.f32 %v167, %v235
    %v237 = vpop.f32.mrb[0].mxu0
    %238 = vdwg.mxu0
    %v239 = vlaneseq
    %v240 = vand.u32 %v239, 127
    %vm241 = vcmp.lt.s32.totalorder %v240, 16
    %v242 = vmul.f32 %v236, 1.442695
    %v243 = vpow.pop %v242
    %v244 = vsel %vm241, %v236, %v243
    %245 = vst [vmem:[%s5] sm:$0xff] %v244
    // Predicated region
    $region34: #{regularization_network_forward.1} parent=1 // pred_check
      _
    $region35: #{regularization_network_forward.1} parent=1 // pred_check_branch
      %247 = sbr.rel (0) target = $region37
    $region36: #{regularization_network_forward.1} parent=1 // pred_region
      _
    $region37: #{regularization_network_forward.1} parent=1 // pred_fallthru
      _
    // Predicated region
    $region38: #{regularization_network_forward.1} parent=1 // pred_check
      _
    $region39: #{regularization_network_forward.1} parent=1 // pred_check_branch
      %249 = sbr.rel (0) target = $region41
    $region40: #{regularization_network_forward.1} parent=1 // pred_region
      _
    $region41: #{regularization_network_forward.1} parent=1 // pred_fallthru
      _
    %250 = vsyncpa [#allocation3], 1
    %251 = vsyncpa [#allocation5], 1

</llo_original>
